<compile_context>
chip_gen: v5e
topology: v5e:2x2
jax: 0.10.0
libtpu: 0.0.40
codegen_flags: <defaults>
</compile_context>

<pallas_src>
import functools

import jax
import jax.numpy as jnp
from jax.experimental import pallas as pl
from jax.experimental.pallas import tpu as pltpu

SMOOTH = 1e-7
P = 2              # matches BinaryDiceLoss(p=2) default
LANES = 128
TILE_ROWS = 8192   # rows of 128 lanes per block -> 4 MiB f32 per input block


def _ceil_div(a, b):
    return -(-a // b)


def _round_up(v, m):
    return ((v + m - 1) // m) * m


def _pow_p(v, p):
    if p == 1:
        return v
    if p == 2:
        return v * v
    return v ** p


def _dice_partial_kernel(x_ref, t_ref, inter_ref, union_ref, *,
                         p, tile_rows, total_rows, num_tiles, tiles_per_split):
    c = pl.program_id(1)          # core-split index
    j = pl.program_id(2)          # row-tile index within the split
    g = c * tiles_per_split + j   # global row-tile index

    @pl.when(j == 0)
    def _init():
        inter_ref[...] = jnp.zeros_like(inter_ref)
        union_ref[...] = jnp.zeros_like(union_ref)

    last_is_ragged = (total_rows % tile_rows) != 0   # static

    @pl.when(g < num_tiles)
    def _accumulate_tile():
        # Narrow dtypes (bf16 inputs / int8 targets) are cast to f32 only here,
        # after the DMA, so the HBM stream stays narrow.
        x = x_ref[0].astype(jnp.float32)   # (tile_rows, 128)
        t = t_ref[0].astype(jnp.float32)

        # sigmoid via tanh identity: a single EUP transcendental per element.
        s = 0.5 * (jnp.tanh(0.5 * x) + 1.0)

        def add(s_, t_):
            inter = s_ * t_
            union = _pow_p(s_, p) + _pow_p(t_, p)
            groups = tile_rows // 8
            # VALU-only partial reduction into the resident (8,128) output block.
            inter_ref[0, 0] += jnp.sum(inter.reshape(groups, 8, LANES), axis=0)
            union_ref[0, 0] += jnp.sum(union.reshape(groups, 8, LANES), axis=0)

        if last_is_ragged:
            # Pay the mask only on the single ragged tile.
            @pl.when(g == num_tiles - 1)
            def _ragged():
                row_ids = jax.lax.broadcasted_iota(
                    jnp.int32, (tile_rows, LANES), 0)
                valid = (row_ids + g * tile_rows) < total_rows
                # Mask BEFORE any product so garbage rows of the partial block
                # cannot contribute (NaN/Inf in the discarded branch is fine).
                add(jnp.where(valid, s, 0.0), jnp.where(valid, t, 0.0))

            @pl.when(g != num_tiles - 1)
            def _full():
                add(s, t)
        else:
            add(s, t)


def binary_dice_loss(inputs, targets, p=P, smooth=SMOOTH, tile_rows=TILE_ROWS):
    """inputs: [B, 1, D, H, W] (f32/bf16 logits); targets: [B, D, H, W]
    (float, int8 or bool) -> scalar loss (f32)."""
    batch = inputs.shape[0]
    x = inputs.reshape(batch, -1)
    t = targets.reshape(batch, -1)
    n = x.shape[1]
    if t.shape != (batch, n):
        raise ValueError("inputs/targets element counts differ")

    # bool -> int8: same byte width, keeps the DMA narrow.
    if t.dtype == jnp.bool_:
        t = t.astype(jnp.int8)

    # Lane pad only if N is not a multiple of 128 (rare for D*H*W volumes).
    # sigmoid(-1e9) saturates to exactly 0 through the tanh identity and the
    # target pad is 0, so padded lanes contribute nothing to either sum.
    lane_pad = (-n) % LANES
    if lane_pad:
        x = jnp.pad(x, ((0, 0), (0, lane_pad)), constant_values=-1e9)
        t = jnp.pad(t, ((0, 0), (0, lane_pad)))
    r = (n + lane_pad) // LANES
    x = x.reshape(batch, r, LANES)   # free, row-major
    t = t.reshape(batch, r, LANES)

    # tr multiple of 32: covers the (8,128)/(16,128)/(32,128) min-tile rules.
    tr = min(_round_up(tile_rows, 32), _round_up(r, 32))
    num_tiles = _ceil_div(r, tr)

    # Give both v7x TensorCores work when the batch axis alone cannot: split the
    # row-tile range into two parallel halves (summed in the epilogue). On
    # single-TC chips / larger batches this is a harmless size-1 axis.
    core_split = 2 if (batch < 2 and num_tiles >= 2) else 1
    tiles_per_split = _ceil_div(num_tiles, core_split)

    kernel = functools.partial(
        _dice_partial_kernel, p=p, tile_rows=tr, total_rows=r,
        num_tiles=num_tiles, tiles_per_split=tiles_per_split)

    def _in_map(b, c, j):
        # Clamp so the tail split's (skipped) extra step never indexes OOB.
        return (b, jnp.minimum(c * tiles_per_split + j, num_tiles - 1), 0)

    def _out_map(b, c, j):
        return (b, c, 0, 0)

    inter_part, union_part = pl.pallas_call(
        kernel,
        out_shape=(
            jax.ShapeDtypeStruct((batch, core_split, 8, LANES), jnp.float32),
            jax.ShapeDtypeStruct((batch, core_split, 8, LANES), jnp.float32)),
        grid_spec=pltpu.PrefetchScalarGridSpec(
            num_scalar_prefetch=0,
            grid=(batch, core_split, tiles_per_split),
            in_specs=[
                pl.BlockSpec((1, tr, LANES), _in_map),
                pl.BlockSpec((1, tr, LANES), _in_map),
            ],
            out_specs=[
                pl.BlockSpec((1, 1, 8, LANES), _out_map),
                pl.BlockSpec((1, 1, 8, LANES), _out_map),
            ],
        ),
        compiler_params=pltpu.CompilerParams(
            dimension_semantics=("parallel", "parallel", "arbitrary"),
            # 2 inputs x 2 buffers x <=4 MiB blocks: fits v5e/v6e (128 MiB) and
            # v7x (64 MiB) physical VMEM with room to spare.
            vmem_limit_bytes=32 * 1024 * 1024,
        ),
    )(x, t)

    # Tiny finalize in plain JAX: one cross-lane/core-split sum per batch.
    inter = jnp.sum(inter_part, axis=(1, 2, 3))
    union = jnp.sum(union_part, axis=(1, 2, 3))
    dice = (2.0 * inter + smooth) / (union + smooth)
    return jnp.mean(1.0 - dice)


def binary_dice_loss_ref(inputs, targets, p=P, smooth=SMOOTH):
    """Pure-JAX reference mirroring the PyTorch forward."""
    b = inputs.shape[0]
    x = jax.nn.sigmoid(inputs.astype(jnp.float32)).reshape(b, -1)
    t = targets.astype(jnp.float32).reshape(b, -1)
    inter = jnp.sum(x * t, axis=1)
    union = jnp.sum(x ** p + t ** p, axis=1)
    dice = (2.0 * inter + smooth) / (union + smooth)
    return jnp.mean(1.0 - dice)


if __name__ == "__main__":
    key = jax.random.PRNGKey(0)
    k1, k2, k3, k4 = jax.random.split(key, 4)

    # Test 1: tiny volume (B=2, C=1, D=4, H=8, W=8) -> N=256, R=2 rows.
    # f32 logits, int8 binary targets; single ragged tile (r < tr).
    B, D, H, W = 2, 4, 8, 8
    inputs1 = jax.random.normal(k1, (B, 1, D, H, W), dtype=jnp.float32)
    targets1 = (jax.random.uniform(k2, (B, D, H, W)) > 0.5).astype(jnp.int8)
    loss1 = jax.block_until_ready(binary_dice_loss(inputs1, targets1))
    ref1 = jax.block_until_ready(binary_dice_loss_ref(inputs1, targets1))
    assert jnp.allclose(loss1, ref1, atol=1e-5, rtol=1e-4), (loss1, ref1)

    # Test 2: B=1 exercises the dual-TensorCore core-split axis; bf16 logits,
    # int8 targets, small explicit tile so the last tile is ragged.
    # D=8, H=16, W=48 -> N=6144, R=48; tile_rows=32 -> 2 tiles (split across c).
    inputs2 = jax.random.normal(k3, (1, 1, 8, 16, 48), dtype=jnp.bfloat16)
    targets2 = (jax.random.uniform(k4, (1, 8, 16, 48)) > 0.5).astype(jnp.int8)
    loss2 = jax.block_until_ready(
        binary_dice_loss(inputs2, targets2, tile_rows=32))
    ref2 = jax.block_until_ready(binary_dice_loss_ref(inputs2, targets2))
    assert jnp.allclose(loss2, ref2, atol=1e-4, rtol=1e-3), (loss2, ref2)

    # Test 3: multi-tile accumulation within one (b, c) run, non-binary float
    # targets (general t**p path), no ragged tile.
    # B=2, D=8, H=16, W=64 -> N=8192, R=64; tile_rows=32 -> 2 full tiles.
    inputs3 = jax.random.normal(k1, (2, 1, 8, 16, 64), dtype=jnp.float32)
    targets3 = jax.random.uniform(k2, (2, 8, 16, 64), dtype=jnp.float32)
    loss3 = jax.block_until_ready(
        binary_dice_loss(inputs3, targets3, tile_rows=32))
    ref3 = jax.block_until_ready(binary_dice_loss_ref(inputs3, targets3))
    assert jnp.allclose(loss3, ref3, atol=1e-5, rtol=1e-4), (loss3, ref3)

    print("KERNEL_OK")
</pallas_src>

<mosaic_0001>
module attributes {stable_mosaic.version = 11 : i64} {
  func.func @_dice_partial_kernel(%arg0: i32, %arg1: i32, %arg2: i32, %arg3: memref<1x32x128xf32, #tpu.memory_space<vmem>>, %arg4: memref<1x32x128xi8, #tpu.memory_space<vmem>>, %arg5: memref<1x1x8x128xf32, #tpu.memory_space<vmem>>, %arg6: memref<1x1x8x128xf32, #tpu.memory_space<vmem>>) attributes {dimension_semantics = [#tpu.dimension_semantics<parallel>, #tpu.dimension_semantics<parallel>, #tpu.dimension_semantics<arbitrary>], iteration_bounds = array<i64: 2, 1, 1>, scalar_prefetch = 0 : i64, scratch_operands = 0 : i64, tpu.core_type = #tpu.core_type<tc>, window_params = [{transform_indices = @transform_0, window_bounds = array<i64: 1, 32, 128>}, {transform_indices = @transform_1, window_bounds = array<i64: 1, 32, 128>}, {transform_indices = @transform_2, window_bounds = array<i64: 1, 1, 8, 128>}, {transform_indices = @transform_3, window_bounds = array<i64: 1, 1, 8, 128>}]} {
    %c1_i32 = arith.constant 1 : i32
    %0 = arith.muli %arg1, %c1_i32 : i32
    %1 = arith.addi %0, %arg2 : i32
    %c0_i32 = arith.constant 0 : i32
    %2 = arith.cmpi eq, %arg2, %c0_i32 : i32
    %3 = arith.extui %2 : i1 to i32
    %c0_i32_0 = arith.constant 0 : i32
    %4 = arith.cmpi ne, %3, %c0_i32_0 : i32
    scf.if %4 {
      %cst = arith.constant 0.000000e+00 : f32
      %8 = vector.broadcast %cst : f32 to vector<1x1x8x128xf32>
      %c0 = arith.constant 0 : index
      %c0_3 = arith.constant 0 : index
      %c0_4 = arith.constant 0 : index
      %c0_5 = arith.constant 0 : index
      %9 = vector.load %arg5[%c0, %c0_3, %c0_4, %c0_5] : memref<1x1x8x128xf32, #tpu.memory_space<vmem>>, vector<1x1x8x128xf32>
      tpu.vector_store %arg5[%c0, %c0_3, %c0_4, %c0_5], %8 {strides = array<i32>} : memref<1x1x8x128xf32, #tpu.memory_space<vmem>>, vector<1x1x8x128xf32>,
      %cst_6 = arith.constant 0.000000e+00 : f32
      %10 = vector.broadcast %cst_6 : f32 to vector<1x1x8x128xf32>
      %c0_7 = arith.constant 0 : index
      %c0_8 = arith.constant 0 : index
      %c0_9 = arith.constant 0 : index
      %c0_10 = arith.constant 0 : index
      %11 = vector.load %arg6[%c0_7, %c0_8, %c0_9, %c0_10] : memref<1x1x8x128xf32, #tpu.memory_space<vmem>>, vector<1x1x8x128xf32>
      tpu.vector_store %arg6[%c0_7, %c0_8, %c0_9, %c0_10], %10 {strides = array<i32>} : memref<1x1x8x128xf32, #tpu.memory_space<vmem>>, vector<1x1x8x128xf32>,
    } else {
    }
    %c1_i32_1 = arith.constant 1 : i32
    %5 = arith.cmpi slt, %1, %c1_i32_1 : i32
    %6 = arith.extui %5 : i1 to i32
    %c0_i32_2 = arith.constant 0 : i32
    %7 = arith.cmpi ne, %6, %c0_i32_2 : i32
    scf.if %7 {
      %c0 = arith.constant 0 : index
      %c0_3 = arith.constant 0 : index
      %c0_4 = arith.constant 0 : index
      %8 = vector.load %arg3[%c0, %c0_3, %c0_4] : memref<1x32x128xf32, #tpu.memory_space<vmem>>, vector<1x32x128xf32>
      %9 = vector.shape_cast %8 : vector<1x32x128xf32> to vector<32x128xf32>
      %c0_5 = arith.constant 0 : index
      %c0_6 = arith.constant 0 : index
      %c0_7 = arith.constant 0 : index
      %10 = vector.load %arg4[%c0_5, %c0_6, %c0_7] : memref<1x32x128xi8, #tpu.memory_space<vmem>>, vector<1x32x128xi8>
      %11 = vector.shape_cast %10 : vector<1x32x128xi8> to vector<32x128xi8>
      %12 = arith.sitofp %11 : vector<32x128xi8> to vector<32x128xf32>
      %cst = arith.constant 5.000000e-01 : f32
      %13 = vector.broadcast %cst : f32 to vector<32x128xf32>
      %14 = arith.mulf %13, %9 : vector<32x128xf32>
      %15 = math.tanh %14 : vector<32x128xf32>
      %cst_8 = arith.constant 1.000000e+00 : f32
      %16 = vector.broadcast %cst_8 : f32 to vector<32x128xf32>
      %17 = arith.addf %15, %16 : vector<32x128xf32>
      %cst_9 = arith.constant 5.000000e-01 : f32
      %18 = vector.broadcast %cst_9 : f32 to vector<32x128xf32>
      %19 = arith.mulf %18, %17 : vector<32x128xf32>
      %c0_i32_10 = arith.constant 0 : i32
      %20 = arith.cmpi eq, %1, %c0_i32_10 : i32
      %21 = arith.extui %20 : i1 to i32
      %c0_i32_11 = arith.constant 0 : i32
      %22 = arith.cmpi ne, %21, %c0_i32_11 : i32
      scf.if %22 {
        %26 = tpu.iota {dimensions = array<i32: 0>} : vector<32x128xi32>
        %c32_i32 = arith.constant 32 : i32
        %27 = arith.muli %1, %c32_i32 : i32
        %28 = vector.broadcast %27 : i32 to vector<32x128xi32>
        %29 = arith.addi %26, %28 : vector<32x128xi32>
        %c2_i32 = arith.constant 2 : i32
        %30 = vector.broadcast %c2_i32 : i32 to vector<32x128xi32>
        %31 = arith.cmpi slt, %29, %30 : vector<32x128xi32>
        %cst_14 = arith.constant 0.000000e+00 : f32
        %32 = vector.broadcast %cst_14 : f32 to vector<32x128xf32>
        %33 = arith.select %31, %19, %32 : vector<32x128xi1>, vector<32x128xf32>
        %cst_15 = arith.constant 0.000000e+00 : f32
        %34 = vector.broadcast %cst_15 : f32 to vector<32x128xf32>
        %35 = arith.select %31, %12, %34 : vector<32x128xi1>, vector<32x128xf32>
        %36 = arith.mulf %33, %35 : vector<32x128xf32>
        %37 = arith.mulf %33, %33 : vector<32x128xf32>
        %38 = arith.mulf %35, %35 : vector<32x128xf32>
        %39 = arith.addf %37, %38 : vector<32x128xf32>
        %c0_16 = arith.constant 0 : index
        %c0_17 = arith.constant 0 : index
        %c0_18 = arith.constant 0 : index
        %c0_19 = arith.constant 0 : index
        %40 = vector.load %arg5[%c0_16, %c0_17, %c0_18, %c0_19] : memref<1x1x8x128xf32, #tpu.memory_space<vmem>>, vector<1x1x8x128xf32>
        %41 = vector.shape_cast %40 : vector<1x1x8x128xf32> to vector<8x128xf32>
        %42 = vector.shape_cast %36 : vector<32x128xf32> to vector<4x8x128xf32>
        %cst_20 = arith.constant dense<0.000000e+00> : vector<8x128xf32>
        %43 = vector.multi_reduction <add>, %42, %cst_20 [0] : vector<4x8x128xf32> to vector<8x128xf32>
        %44 = arith.addf %41, %43 : vector<8x128xf32>
        %c0_21 = arith.constant 0 : index
        %c0_22 = arith.constant 0 : index
        %c0_23 = arith.constant 0 : index
        %c0_24 = arith.constant 0 : index
        %45 = vector.load %arg5[%c0_21, %c0_22, %c0_23, %c0_24] : memref<1x1x8x128xf32, #tpu.memory_space<vmem>>, vector<1x1x8x128xf32>
        %46 = vector.shape_cast %45 : vector<1x1x8x128xf32> to vector<8x128xf32>
        %47 = vector.shape_cast %44 : vector<8x128xf32> to vector<1x1x8x128xf32>
        tpu.vector_store %arg5[%c0_21, %c0_22, %c0_23, %c0_24], %47 {strides = array<i32>} : memref<1x1x8x128xf32, #tpu.memory_space<vmem>>, vector<1x1x8x128xf32>,
        %c0_25 = arith.constant 0 : index
        %c0_26 = arith.constant 0 : index
        %c0_27 = arith.constant 0 : index
        %c0_28 = arith.constant 0 : index
        %48 = vector.load %arg6[%c0_25, %c0_26, %c0_27, %c0_28] : memref<1x1x8x128xf32, #tpu.memory_space<vmem>>, vector<1x1x8x128xf32>
        %49 = vector.shape_cast %48 : vector<1x1x8x128xf32> to vector<8x128xf32>
        %50 = vector.shape_cast %39 : vector<32x128xf32> to vector<4x8x128xf32>
        %cst_29 = arith.constant dense<0.000000e+00> : vector<8x128xf32>
        %51 = vector.multi_reduction <add>, %50, %cst_29 [0] : vector<4x8x128xf32> to vector<8x128xf32>
        %52 = arith.addf %49, %51 : vector<8x128xf32>
        %c0_30 = arith.constant 0 : index
        %c0_31 = arith.constant 0 : index
        %c0_32 = arith.constant 0 : index
        %c0_33 = arith.constant 0 : index
        %53 = vector.load %arg6[%c0_30, %c0_31, %c0_32, %c0_33] : memref<1x1x8x128xf32, #tpu.memory_space<vmem>>, vector<1x1x8x128xf32>
        %54 = vector.shape_cast %53 : vector<1x1x8x128xf32> to vector<8x128xf32>
        %55 = vector.shape_cast %52 : vector<8x128xf32> to vector<1x1x8x128xf32>
        tpu.vector_store %arg6[%c0_30, %c0_31, %c0_32, %c0_33], %55 {strides = array<i32>} : memref<1x1x8x128xf32, #tpu.memory_space<vmem>>, vector<1x1x8x128xf32>,
      } else {
      }
      %c0_i32_12 = arith.constant 0 : i32
      %23 = arith.cmpi ne, %1, %c0_i32_12 : i32
      %24 = arith.extui %23 : i1 to i32
      %c0_i32_13 = arith.constant 0 : i32
      %25 = arith.cmpi ne, %24, %c0_i32_13 : i32
      scf.if %25 {
        %26 = arith.mulf %19, %12 : vector<32x128xf32>
        %27 = arith.mulf %19, %19 : vector<32x128xf32>
        %28 = arith.mulf %12, %12 : vector<32x128xf32>
        %29 = arith.addf %27, %28 : vector<32x128xf32>
        %c0_14 = arith.constant 0 : index
        %c0_15 = arith.constant 0 : index
        %c0_16 = arith.constant 0 : index
        %c0_17 = arith.constant 0 : index
        %30 = vector.load %arg5[%c0_14, %c0_15, %c0_16, %c0_17] : memref<1x1x8x128xf32, #tpu.memory_space<vmem>>, vector<1x1x8x128xf32>
        %31 = vector.shape_cast %30 : vector<1x1x8x128xf32> to vector<8x128xf32>
        %32 = vector.shape_cast %26 : vector<32x128xf32> to vector<4x8x128xf32>
        %cst_18 = arith.constant dense<0.000000e+00> : vector<8x128xf32>
        %33 = vector.multi_reduction <add>, %32, %cst_18 [0] : vector<4x8x128xf32> to vector<8x128xf32>
        %34 = arith.addf %31, %33 : vector<8x128xf32>
        %c0_19 = arith.constant 0 : index
        %c0_20 = arith.constant 0 : index
        %c0_21 = arith.constant 0 : index
        %c0_22 = arith.constant 0 : index
        %35 = vector.load %arg5[%c0_19, %c0_20, %c0_21, %c0_22] : memref<1x1x8x128xf32, #tpu.memory_space<vmem>>, vector<1x1x8x128xf32>
        %36 = vector.shape_cast %35 : vector<1x1x8x128xf32> to vector<8x128xf32>
        %37 = vector.shape_cast %34 : vector<8x128xf32> to vector<1x1x8x128xf32>
        tpu.vector_store %arg5[%c0_19, %c0_20, %c0_21, %c0_22], %37 {strides = array<i32>} : memref<1x1x8x128xf32, #tpu.memory_space<vmem>>, vector<1x1x8x128xf32>,
        %c0_23 = arith.constant 0 : index
        %c0_24 = arith.constant 0 : index
        %c0_25 = arith.constant 0 : index
        %c0_26 = arith.constant 0 : index
        %38 = vector.load %arg6[%c0_23, %c0_24, %c0_25, %c0_26] : memref<1x1x8x128xf32, #tpu.memory_space<vmem>>, vector<1x1x8x128xf32>
        %39 = vector.shape_cast %38 : vector<1x1x8x128xf32> to vector<8x128xf32>
        %40 = vector.shape_cast %29 : vector<32x128xf32> to vector<4x8x128xf32>
        %cst_27 = arith.constant dense<0.000000e+00> : vector<8x128xf32>
        %41 = vector.multi_reduction <add>, %40, %cst_27 [0] : vector<4x8x128xf32> to vector<8x128xf32>
        %42 = arith.addf %39, %41 : vector<8x128xf32>
        %c0_28 = arith.constant 0 : index
        %c0_29 = arith.constant 0 : index
        %c0_30 = arith.constant 0 : index
        %c0_31 = arith.constant 0 : index
        %43 = vector.load %arg6[%c0_28, %c0_29, %c0_30, %c0_31] : memref<1x1x8x128xf32, #tpu.memory_space<vmem>>, vector<1x1x8x128xf32>
        %44 = vector.shape_cast %43 : vector<1x1x8x128xf32> to vector<8x128xf32>
        %45 = vector.shape_cast %42 : vector<8x128xf32> to vector<1x1x8x128xf32>
        tpu.vector_store %arg6[%c0_28, %c0_29, %c0_30, %c0_31], %45 {strides = array<i32>} : memref<1x1x8x128xf32, #tpu.memory_space<vmem>>, vector<1x1x8x128xf32>,
      } else {
      }
    } else {
    }
    return
  }
  func.func @transform_0(%arg0: i32, %arg1: i32, %arg2: i32) -> (i32, i32, i32) {
    %c1_i32 = arith.constant 1 : i32
    %0 = arith.muli %arg1, %c1_i32 : i32
    %1 = arith.addi %0, %arg2 : i32
    %c0_i32 = arith.constant 0 : i32
    %2 = arith.minsi %1, %c0_i32 : i32
    %c0_i32_0 = arith.constant 0 : i32
    %c0_i32_1 = arith.constant 0 : i32
    return %arg0, %2, %c0_i32_0 : i32, i32, i32
  }
  func.func @transform_1(%arg0: i32, %arg1: i32, %arg2: i32) -> (i32, i32, i32) {
    %c1_i32 = arith.constant 1 : i32
    %0 = arith.muli %arg1, %c1_i32 : i32
    %1 = arith.addi %0, %arg2 : i32
    %c0_i32 = arith.constant 0 : i32
    %2 = arith.minsi %1, %c0_i32 : i32
    %c0_i32_0 = arith.constant 0 : i32
    %c0_i32_1 = arith.constant 0 : i32
    return %arg0, %2, %c0_i32_0 : i32, i32, i32
  }
  func.func @transform_2(%arg0: i32, %arg1: i32, %arg2: i32) -> (i32, i32, i32, i32) {
    %c0_i32 = arith.constant 0 : i32
    %c0_i32_0 = arith.constant 0 : i32
    %c0_i32_1 = arith.constant 0 : i32
    return %arg0, %arg1, %c0_i32, %c0_i32_0 : i32, i32, i32, i32
  }
  func.func @transform_3(%arg0: i32, %arg1: i32, %arg2: i32) -> (i32, i32, i32, i32) {
    %c0_i32 = arith.constant 0 : i32
    %c0_i32_0 = arith.constant 0 : i32
    %c0_i32_1 = arith.constant 0 : i32
    return %arg0, %arg1, %c0_i32, %c0_i32_0 : i32, i32, i32, i32
  }
}

</mosaic_0001>

<llo_original>
// kernel: tpu_custom_call.1
$region0: #{tpu_custom_call.1}
  #allocation0 [shape = 'u32[]', space=smem, size = 0x4, offset = 0x4, fixed_abs, tag = 'smem constant byte address 0x4 - core index']
  #allocation1 [shape = 'u32[72,128]{1,0:T(1,128)}', space=vmem, size = 0x9000, scoped, tag = 'internal scratch']
  %s0 = inlined_call_operand.hbm [shape: f32[2,2,128], index: 0, kind: input, shape index: {}]
  %s1 = inlined_call_operand.hbm [shape: s8[2,2,128], index: 1, kind: input, shape index: {}]
  %s2 = inlined_call_operand.hbm [shape: f32[2,1,8,128], index: 2, kind: output, shape index: {0}]
  %s3 = inlined_call_operand.hbm [shape: f32[2,1,8,128], index: 3, kind: output, shape index: {1}]
  %4 = xla_tuple %s2, %s3
  %s5 = sld [smem:[#allocation0]]
  $region73: #{tpu_custom_call.1} parent=0
    _
  %s7 = ssub.s32 1, %s5
  %s8 = scalar_select 0, %s7, %s5
  $region1: #{tpu_custom_call.1} parent=0
    #allocation2 [shape = 'u8[32768]{0}', space=vmem, size = 0x8000, scoped, tag = 'input window, operand 0']
    #allocation3 [shape = 's32[2]{0}', space=sflag, size = 0x8, scoped, tag = 'scoped memory for tpu_custom_call.1']
    #allocation4 [shape = 's32[2]{0}', space=sflag, size = 0x8, scoped, tag = 'scoped memory for tpu_custom_call.1']
    #allocation5 [shape = 'u8[8192]{0}', space=vmem, size = 0x2000, scoped, tag = 'input window, operand 1']
    #allocation6 [shape = 's32[2]{0}', space=sflag, size = 0x8, scoped, tag = 'scoped memory for tpu_custom_call.1']
    #allocation7 [shape = 'u8[8192]{0}', space=vmem, size = 0x2000, scoped, tag = 'output window, operand 0']
    #allocation8 [shape = 'u8[8192]{0}', space=vmem, size = 0x2000, scoped, tag = 'output window, operand 1']
    #allocation9 [shape = 's32[2]{0}', space=sflag, size = 0x8, scoped, tag = 'scoped memory for tpu_custom_call.1']
    %9 = vsyncpa [#allocation3], 0
    %s10 = scalar_lea.sflag [#allocation3], 1
    %11 = vsyncpa %s10, 0
    %12 = vsyncpa [#allocation6], 0
    %s13 = scalar_lea.sflag [#allocation6], 1
    %14 = vsyncpa %s13, 0
    %15 = vsyncpa [#allocation4], 0
    %s16 = scalar_lea.sflag [#allocation4], 1
    %17 = vsyncpa %s16, 0
    %18 = vsyncpa [#allocation9], 0
    %s19 = scalar_lea.sflag [#allocation9], 1
    %20 = vsyncpa %s19, 0
    loop: start=0, step=1, limit=4
    $region2: #{tpu_custom_call.1} parent=1 // loop_pre_header
      _
    $region3: #{tpu_custom_call.1} parent=1 // loop_header
      %s22 = sphi 0, %s26
      %p23 = scmp.ge.s32.totalorder %s22, 4
      %s29 = sphi 0, %s48
      %s30 = sphi 0, %s44
      %s31 = sphi 0, %s40
      %s32 = sphi 0, %s29
      %s33 = sphi 0, %s30
      %s34 = sphi 0, %s31
      %s35 = sphi 0, %s32
      %s36 = sphi 0, %s33
      %s37 = sphi 0, %s34
      %s59 = sphi 0, %s61
      %s62 = sphi 0, %s59
      %s63 = sphi 0, %s62
      %s79 = sphi 0, %s63
      %s93 = sphi 0, %s95
      %s96 = sphi 0, %s93
      %s97 = sphi 0, %s96
      %s113 = sphi 0, %s97
      %s121 = sphi 0, %s123
      %s124 = sphi 0, %s121
      %s125 = sphi 0, %s124
      %s141 = sphi 0, %s125
      %s149 = sphi 0, %s151
      %s152 = sphi 0, %s149
      %s153 = sphi 0, %s152
      %s169 = sphi 0, %s153
    $region4: #{tpu_custom_call.1} parent=1 // loop_header_branch
      %25 = sbr.rel (%p23) target = $region8
    $region5: #{tpu_custom_call.1} parent=1 // loop_body
      %s27 = ssub.s32 %s22, 1
      %s28 = ssub.s32 %s22, 2
      %s38 = sadd.s32 1, %s31
      %p39 = scmp.ge.s32.totalorder %s38, 1
      %s40 = scalar_select %p39, 0, %s38
      %s41 = sadd.s32 1, %s30
      %s42 = scalar_select %p39, %s41, %s30
      %p43 = scmp.ge.s32.totalorder %s42, 1
      %s44 = scalar_select %p43, 0, %s42
      %s45 = sadd.s32 1, %s29
      %s46 = scalar_select %p43, %s45, %s29
      %p47 = scmp.ge.s32.totalorder %s46, 2
      %s48 = scalar_select %p47, 0, %s46
      %s49 = sadd.s32 %s30, %s31
      %p50 = scmp.lt.s32.totalorder %s49, 0
      %s51 = scalar_select %p50, %s49, 0
      %s52 = sadd.s32 %s44, %s40
      %p53 = scmp.lt.s32.totalorder %s52, 0
      %s54 = scalar_select %p53, %s52, 0
      %s55 = ssub.s32 %s29, %s48
      %s56 = ssub.s32 %s51, %s54
      %s57 = sor.u32 %s55, %s56
      %p58 = scmp.eq.s32.totalorder %s57, 0
      %s60 = sadd.s32 %s59, 1
      %s61 = scalar_select %p58, %s59, %s60
      %p64 = pneg %p58
      %p65 = scmp.eq.s32.totalorder %s22, 1
      %p66 = por %p64, %p65
      %p67 = scmp.ne.s32.totalorder %s59, %s62
      %p68 = scmp.eq.s32.totalorder %s22, 0
      %p69 = por %p67, %p68
      %p70 = scmp.ne.s32.totalorder %s59, %s62
      %p71 = scmp.eq.s32.totalorder %s27, 1
      %p72 = por %p70, %p71
      %p73 = scmp.ne.s32.totalorder %s62, %s63
      %p74 = scmp.eq.s32.totalorder %s27, 0
      %p75 = por %p73, %p74
      %p76 = scmp.ne.s32.totalorder %s62, %s63
      %p77 = scmp.eq.s32.totalorder %s28, 1
      %p78 = por %p76, %p77
      %p80 = scmp.ne.s32.totalorder %s63, %s79
      %p81 = scmp.eq.s32.totalorder %s28, 0
      %p82 = por %p80, %p81
      %s83 = sadd.s32 %s30, %s31
      %p84 = scmp.lt.s32.totalorder %s83, 0
      %s85 = scalar_select %p84, %s83, 0
      %s86 = sadd.s32 %s44, %s40
      %p87 = scmp.lt.s32.totalorder %s86, 0
      %s88 = scalar_select %p87, %s86, 0
      %s89 = ssub.s32 %s29, %s48
      %s90 = ssub.s32 %s85, %s88
      %s91 = sor.u32 %s89, %s90
      %p92 = scmp.eq.s32.totalorder %s91, 0
      %s94 = sadd.s32 %s93, 1
      %s95 = scalar_select %p92, %s93, %s94
      %p98 = pneg %p92
      %p99 = scmp.eq.s32.totalorder %s22, 1
      %p100 = por %p98, %p99
      %p101 = scmp.ne.s32.totalorder %s93, %s96
      %p102 = scmp.eq.s32.totalorder %s22, 0
      %p103 = por %p101, %p102
      %p104 = scmp.ne.s32.totalorder %s93, %s96
      %p105 = scmp.eq.s32.totalorder %s27, 1
      %p106 = por %p104, %p105
      %p107 = scmp.ne.s32.totalorder %s96, %s97
      %p108 = scmp.eq.s32.totalorder %s27, 0
      %p109 = por %p107, %p108
      %p110 = scmp.ne.s32.totalorder %s96, %s97
      %p111 = scmp.eq.s32.totalorder %s28, 1
      %p112 = por %p110, %p111
      %p114 = scmp.ne.s32.totalorder %s97, %s113
      %p115 = scmp.eq.s32.totalorder %s28, 0
      %p116 = por %p114, %p115
      %s117 = ssub.s32 %s29, %s48
      %s118 = ssub.s32 %s30, %s44
      %s119 = sor.u32 %s117, %s118
      %p120 = scmp.eq.s32.totalorder %s119, 0
      %s122 = sadd.s32 %s121, 1
      %s123 = scalar_select %p120, %s121, %s122
      %p126 = pneg %p120
      %p127 = scmp.eq.s32.totalorder %s22, 1
      %p128 = por %p126, %p127
      %p129 = scmp.ne.s32.totalorder %s121, %s124
      %p130 = scmp.eq.s32.totalorder %s22, 0
      %p131 = por %p129, %p130
      %p132 = scmp.ne.s32.totalorder %s121, %s124
      %p133 = scmp.eq.s32.totalorder %s27, 1
      %p134 = por %p132, %p133
      %p135 = scmp.ne.s32.totalorder %s124, %s125
      %p136 = scmp.eq.s32.totalorder %s27, 0
      %p137 = por %p135, %p136
      %p138 = scmp.ne.s32.totalorder %s124, %s125
      %p139 = scmp.eq.s32.totalorder %s28, 1
      %p140 = por %p138, %p139
      %p142 = scmp.ne.s32.totalorder %s125, %s141
      %p143 = scmp.eq.s32.totalorder %s28, 0
      %p144 = por %p142, %p143
      %s145 = ssub.s32 %s29, %s48
      %s146 = ssub.s32 %s30, %s44
      %s147 = sor.u32 %s145, %s146
      %p148 = scmp.eq.s32.totalorder %s147, 0
      %s150 = sadd.s32 %s149, 1
      %s151 = scalar_select %p148, %s149, %s150
      %p154 = pneg %p148
      %p155 = scmp.eq.s32.totalorder %s22, 1
      %p156 = por %p154, %p155
      %p157 = scmp.ne.s32.totalorder %s149, %s152
      %p158 = scmp.eq.s32.totalorder %s22, 0
      %p159 = por %p157, %p158
      %p160 = scmp.ne.s32.totalorder %s149, %s152
      %p161 = scmp.eq.s32.totalorder %s27, 1
      %p162 = por %p160, %p161
      %p163 = scmp.ne.s32.totalorder %s152, %s153
      %p164 = scmp.eq.s32.totalorder %s27, 0
      %p165 = por %p163, %p164
      %p166 = scmp.ne.s32.totalorder %s152, %s153
      %p167 = scmp.eq.s32.totalorder %s28, 1
      %p168 = por %p166, %p167
      %p170 = scmp.ne.s32.totalorder %s153, %s169
      %p171 = scmp.eq.s32.totalorder %s28, 0
      %p172 = por %p170, %p171
      %p173 = scmp.le.s32.totalorder 1, %s22
      %p174 = scmp.lt.s32.totalorder %s22, 3
      %p175 = pnand %p173, %p174
      %p176 = pneg %p175
      // Predicated region
      $region9: #{tpu_custom_call.1} parent=5 // pred_check
        _
      $region10: #{tpu_custom_call.1} parent=5 // pred_check_branch
        %178 = sbr.rel (%p175) target = $region12
      $region11: #{tpu_custom_call.1} parent=5 // pred_region
        %s179 = ssub.s32 %s22, 1
      $region12: #{tpu_custom_call.1} parent=5 // pred_fallthru
        _
      %p180 = scmp.lt.s32.totalorder %s22, 2
      // Predicated region
      $region13: #{tpu_custom_call.1} parent=5 // pred_check
        %p181 = pneg %p180
      $region14: #{tpu_custom_call.1} parent=5 // pred_check_branch
        %183 = sbr.rel (%p181) target = $region16
      $region15: #{tpu_custom_call.1} parent=5 // pred_region
        // Predicated region
        $region17: #{tpu_custom_call.1} parent=15 // pred_check
          %p184 = pneg %p69
        $region18: #{tpu_custom_call.1} parent=15 // pred_check_branch
          %186 = sbr.rel (%p184) target = $region20
        $region19: #{tpu_custom_call.1} parent=15 // pred_region
          %s187 = sand.u32 %s59, 1
          %s188 = scalar_lea.sflag [#allocation3], %s187
          %s189 = sand.u32 %s59, 1
          %s190 = smul.addr %s189, 32
          %s191 = scalar_lea.vmem [#allocation2], %s190
          %s192 = sadd.s32 %s30, %s31
          %p193 = scmp.lt.s32.totalorder %s192, 0
          %s194 = scalar_select %p193, %s192, 0
          %s195 = smul.u32 16, %s194
          %s196 = ssub.s32 1, %s195
          %s197 = smul.u32 2, %s196
          %s198 = ssub.s32 32, %s197
          %s199 = sshll.u32 %s198, 4
          %200 = vsyncadd %s188, %s199
          %p201 = scmp.ne.s32.totalorder 0, %s197
          %s202 = sadd.s32 %s195, %s29
          %s203 = smul.addr %s202, 2
          %s204 = scalar_lea.hbm %s0, %s203
          %s205 = smul.u32 2, %s196
          %s206 = sshll.u32 %s204, 4
          %s207 = int_to_ptr.hbm [resolvable:$true] %s206
          %s208 = sshll.u32 %s191, 4
          %s209 = int_to_ptr.vmem [resolvable:$true] %s208
          %s210 = sshll.u32 %s205, 4
          %214 = dma.hbm_to_vmem [thread:$0]  (%p201), %s207, %s210, %s209, %s188, 32, 32, 2
        $region20: #{tpu_custom_call.1} parent=15 // pred_fallthru
          _
        // Predicated region
        $region21: #{tpu_custom_call.1} parent=15 // pred_check
          %p215 = pneg %p103
        $region22: #{tpu_custom_call.1} parent=15 // pred_check_branch
          %217 = sbr.rel (%p215) target = $region24
        $region23: #{tpu_custom_call.1} parent=15 // pred_region
          %s218 = sand.u32 %s93, 1
          %s219 = scalar_lea.sflag [#allocation6], %s218
          %s220 = sand.u32 %s93, 1
          %s221 = smul.addr %s220, 8
          %s222 = scalar_lea.vmem [#allocation5], %s221
          %s223 = sadd.s32 %s30, %s31
          %p224 = scmp.lt.s32.totalorder %s223, 0
          %s225 = scalar_select %p224, %s223, 0
          %s226 = smul.u32 8, %s225
          %s227 = ssub.s32 1, %s226
          %s228 = ssub.s32 8, %s227
          %s229 = sshll.u32 %s228, 4
          %230 = vsyncadd %s219, %s229
          %p231 = scmp.ne.s32.totalorder 0, %s227
          %s232 = sadd.s32 %s226, %s29
          %s233 = scalar_lea.hbm %s1, %s232
          %s234 = sshll.u32 %s233, 4
          %s235 = int_to_ptr.hbm [resolvable:$true] %s234
          %s236 = sshll.u32 %s222, 4
          %s237 = int_to_ptr.vmem [resolvable:$true] %s236
          %s238 = sshll.u32 %s227, 4
          %242 = dma.hbm_to_vmem [thread:$0]  (%p231), %s235, %s238, %s237, %s219, 16, 16, 1
        $region24: #{tpu_custom_call.1} parent=15 // pred_fallthru
          _
      $region16: #{tpu_custom_call.1} parent=5 // pred_fallthru
        _
      %p243 = scmp.le.s32.totalorder 1, %s22
      %p244 = scmp.lt.s32.totalorder %s22, 3
      %p245 = pnand %p243, %p244
      %p246 = pneg %p245
      // Predicated region
      $region25: #{tpu_custom_call.1} parent=5 // pred_check
        _
      $region26: #{tpu_custom_call.1} parent=5 // pred_check_branch
        %248 = sbr.rel (%p245) target = $region28
      $region27: #{tpu_custom_call.1} parent=5 // pred_region
        %s249 = ssub.s32 %s22, 1
        %s250 = sand.u32 %s62, 1
        %s251 = scalar_lea.sflag [#allocation3], %s250
        %s252 = sand.u32 %s62, 1
        %s253 = smul.addr %s252, 32
        %s254 = scalar_lea.vmem [#allocation2], %s253
        // Predicated region
        $region29: #{tpu_custom_call.1} parent=27 // pred_check
          %p255 = pneg %p75
        $region30: #{tpu_custom_call.1} parent=27 // pred_check_branch
          %257 = sbr.rel (%p255) target = $region32
        $region31: #{tpu_custom_call.1} parent=27 // pred_region
          %259 = dma.done %s251, 512
        $region32: #{tpu_custom_call.1} parent=27 // pred_fallthru
          _
        %s260 = sand.u32 %s96, 1
        %s261 = scalar_lea.sflag [#allocation6], %s260
        %s262 = sand.u32 %s96, 1
        %s263 = smul.addr %s262, 8
        %s264 = scalar_lea.vmem [#allocation5], %s263
        // Predicated region
        $region33: #{tpu_custom_call.1} parent=27 // pred_check
          %p265 = pneg %p109
        $region34: #{tpu_custom_call.1} parent=27 // pred_check_branch
          %267 = sbr.rel (%p265) target = $region36
        $region35: #{tpu_custom_call.1} parent=27 // pred_region
          %269 = dma.done %s261, 128
        $region36: #{tpu_custom_call.1} parent=27 // pred_fallthru
          _
        %s270 = sand.u32 %s62, 1
        %s271 = scalar_lea.sflag [#allocation3], %s270
        %s272 = sand.u32 %s62, 1
        %s273 = smul.addr %s272, 32
        %s274 = scalar_lea.vmem [#allocation2], %s273
        %p275 = pneg %p75
        %p276 = pneg %p72
        %s277 = sand.u32 %s96, 1
        %s278 = scalar_lea.sflag [#allocation6], %s277
        %s279 = sand.u32 %s96, 1
        %s280 = smul.addr %s279, 8
        %s281 = scalar_lea.vmem [#allocation5], %s280
        %p282 = pneg %p109
        %p283 = pneg %p106
        %p284 = pneg %p137
        %p285 = pneg %p134
        %s286 = sand.u32 %s124, 1
        %s287 = scalar_lea.sflag [#allocation4], %s286
        %s288 = sand.u32 %s124, 1
        %s289 = smul.addr %s288, 8
        %s290 = scalar_lea.vmem [#allocation7], %s289
        %p291 = pneg %p165
        %p292 = pneg %p162
        %s293 = sand.u32 %s152, 1
        %s294 = scalar_lea.sflag [#allocation9], %s293
        %s295 = sand.u32 %s152, 1
        %s296 = smul.addr %s295, 8
        %s297 = scalar_lea.vmem [#allocation8], %s296
        %s298 = sadd.s32 %s33, %s34
        %p299 = scmp.lt.s32.totalorder %s298, 0
        %s300 = scalar_select %p299, %s298, 0
        %s301 = smul.u32 16, %s300
        %s302 = ssub.s32 1, %s301
        %s303 = smul.u32 2, %s302
        %s304 = sadd.s32 %s33, %s34
        %p305 = scmp.lt.s32.totalorder %s304, 0
        %s306 = scalar_select %p305, %s304, 0
        %s307 = smul.u32 8, %s306
        %s308 = ssub.s32 1, %s307
        %s309 = sadd.s32 %s33, %s34
        %p310 = scmp.eq.s32.totalorder %s34, 0
        // Predicated region
        $region37: #{tpu_custom_call.1} parent=27 // pred_check
          %p311 = pneg %p310
        $region38: #{tpu_custom_call.1} parent=27 // pred_check_branch
          %313 = sbr.rel (%p311) target = $region40
        $region39: #{tpu_custom_call.1} parent=27 // pred_region
          %314 = vst [vmem:[%s290] sm:$0xff] 0.0
          %315 = vst [vmem:[%s297] sm:$0xff] 0.0
        $region40: #{tpu_custom_call.1} parent=27 // pred_fallthru
          _
        %p316 = scmp.lt.s32.totalorder %s309, 1
        // Predicated region
        $region41: #{tpu_custom_call.1} parent=27 // pred_check
          %p317 = pneg %p316
        $region42: #{tpu_custom_call.1} parent=27 // pred_check_branch
          %319 = sbr.rel (%p317) target = $region44
        $region43: #{tpu_custom_call.1} parent=27 // pred_region
          %v320 = vld [vmem:[%s254] sm:$0xff]
          %v321 = vld [vmem:[%s254 + $0x8] sm:$0xff]
          %v322 = vld [vmem:[%s254 + $0x10] sm:$0xff]
          %v323 = vld [vmem:[%s254 + $0x18] sm:$0xff]
          %v324 = vld [vmem:[%s264] sm:$0x1]
          %v325 = vld [vmem:[%s264 + $0x1] sm:$0x1]
          %v326 = vld [vmem:[%s264 + $0x2] sm:$0x1]
          %v327 = vld [vmem:[%s264 + $0x3] sm:$0x1]
          %v328 = vld [vmem:[%s264 + $0x4] sm:$0x1]
          %v329 = vld [vmem:[%s264 + $0x5] sm:$0x1]
          %v330 = vld [vmem:[%s264 + $0x6] sm:$0x1]
          %v331 = vld [vmem:[%s264 + $0x7] sm:$0x1]
          %v332 = vunpack.c.0.s8 %v324
          %v333 = vunpack.c.0.s8 %v325
          %v334 = vunpack.c.0.s8 %v326
          %v335 = vunpack.c.0.s8 %v327
          %v336 = vunpack.c.0.s8 %v328
          %v337 = vunpack.c.0.s8 %v329
          %v338 = vunpack.c.0.s8 %v330
          %v339 = vunpack.c.0.s8 %v331
          %v340 = vcvt.s32.f32 %v332
          %v341 = vcvt.s32.f32 %v333
          %v342 = vcvt.s32.f32 %v334
          %v343 = vcvt.s32.f32 %v335
          %v344 = vcvt.s32.f32 %v336
          %v345 = vcvt.s32.f32 %v337
          %v346 = vcvt.s32.f32 %v338
          %v347 = vcvt.s32.f32 %v339
          %v348 = vmul.f32 %v320, 0.5
          %v349 = vmul.f32 %v321, 0.5
          %v350 = vmul.f32 %v322, 0.5
          %v351 = vmul.f32 %v323, 0.5
          %v352 = vtanh.pop %v348
          %v353 = vtanh.pop %v349
          %v354 = vtanh.pop %v350
          %v355 = vtanh.pop %v351
          %v356 = vadd.f32 %v352, 1.0
          %v357 = vadd.f32 %v353, 1.0
          %v358 = vadd.f32 %v354, 1.0
          %v359 = vadd.f32 %v355, 1.0
          %v360 = vmul.f32 %v356, 0.5
          %v361 = vmul.f32 %v357, 0.5
          %v362 = vmul.f32 %v358, 0.5
          %v363 = vmul.f32 %v359, 0.5
          %p364 = scmp.eq.s32.totalorder %s309, 0
          // Predicated region
          $region45: #{tpu_custom_call.1} parent=43 // pred_check
            %p365 = pneg %p364
          $region46: #{tpu_custom_call.1} parent=43 // pred_check_branch
            %367 = sbr.rel (%p365) target = $region48
          $region47: #{tpu_custom_call.1} parent=43 // pred_region
            %v368 = vlaneseq
            %v369 = vshrl.u32 %v368, 7
            %v370 = vadd.s32 %v369, 8
            %v371 = vadd.s32 %v369, 16
            %v372 = vadd.s32 %v369, 24
            %s373 = smul.u32 %s309, 32
            %v374 = vstv %s373
            %v375 = vadd.s32 %v369, %v374
            %v376 = vadd.s32 %v370, %v374
            %v377 = vadd.s32 %v371, %v374
            %v378 = vadd.s32 %v372, %v374
            %vm379 = vcmp.lt.s32.totalorder %v375, 2
            %vm380 = vcmp.lt.s32.totalorder %v376, 2
            %vm381 = vcmp.lt.s32.totalorder %v377, 2
            %vm382 = vcmp.lt.s32.totalorder %v378, 2
            %v383 = vsel %vm379, %v360, 0.0
            %v384 = vsel %vm380, %v361, 0.0
            %v385 = vsel %vm381, %v362, 0.0
            %v386 = vsel %vm382, %v363, 0.0
            %395 = vst [vmem:[#allocation1] ss:$2 sm:$0xff] %v340
            %s396 = scalar_lea.vmem [#allocation1], 1
            %397 = vst [vmem:[%s396] ss:$2 sm:$0xff] %v341
            %s398 = scalar_lea.vmem [#allocation1], 16
            %399 = vst [vmem:[%s398] ss:$2 sm:$0xff] %v342
            %s400 = scalar_lea.vmem [#allocation1], 17
            %401 = vst [vmem:[%s400] ss:$2 sm:$0xff] %v343
            %s402 = scalar_lea.vmem [#allocation1], 32
            %403 = vst [vmem:[%s402] ss:$2 sm:$0xff] %v344
            %s404 = scalar_lea.vmem [#allocation1], 33
            %405 = vst [vmem:[%s404] ss:$2 sm:$0xff] %v345
            %s406 = scalar_lea.vmem [#allocation1], 48
            %407 = vst [vmem:[%s406] ss:$2 sm:$0xff] %v346
            %s408 = scalar_lea.vmem [#allocation1], 49
            %409 = vst [vmem:[%s408] ss:$2 sm:$0xff] %v347
            %v410 = vld.sshfl [vmem:[#allocation1] sm:$0xff pattern:$0x75316420]
            %v411 = vld.sshfl [vmem:[#allocation1 + $0x10] sm:$0xff pattern:$0x75316420]
            %v412 = vld.sshfl [vmem:[#allocation1 + $0x20] sm:$0xff pattern:$0x75316420]
            %v413 = vld.sshfl [vmem:[#allocation1 + $0x30] sm:$0xff pattern:$0x75316420]
            %v418 = vsel %vm379, %v410, 0.0
            %v419 = vsel %vm380, %v411, 0.0
            %v420 = vsel %vm381, %v412, 0.0
            %v421 = vsel %vm382, %v413, 0.0
            %v422 = vmul.f32 %v383, %v418
            %v423 = vmul.f32 %v384, %v419
            %v424 = vmul.f32 %v385, %v420
            %v425 = vmul.f32 %v386, %v421
            %v426 = vmul.f32 %v383, %v383
            %v427 = vmul.f32 %v384, %v384
            %v428 = vmul.f32 %v385, %v385
            %v429 = vmul.f32 %v386, %v386
            %v430 = vmul.f32 %v418, %v418
            %v431 = vmul.f32 %v419, %v419
            %v432 = vmul.f32 %v420, %v420
            %v433 = vmul.f32 %v421, %v421
            %v434 = vadd.f32 %v426, %v430
            %v435 = vadd.f32 %v427, %v431
            %v436 = vadd.f32 %v428, %v432
            %v437 = vadd.f32 %v429, %v433
            %v438 = vld [vmem:[%s290] sm:$0xff]
            %v439 = vadd.f32 %v422, %v423
            %v440 = vadd.f32 %v439, %v424
            %v441 = vadd.f32 %v440, %v425
            %v442 = vadd.f32 %v438, %v441
            %443 = vst [vmem:[%s290] sm:$0xff] %v442
            %v444 = vld [vmem:[%s297] sm:$0xff]
            %v445 = vadd.f32 %v434, %v435
            %v446 = vadd.f32 %v445, %v436
            %v447 = vadd.f32 %v446, %v437
            %v448 = vadd.f32 %v444, %v447
            %449 = vst [vmem:[%s297] sm:$0xff] %v448
          $region48: #{tpu_custom_call.1} parent=43 // pred_fallthru
            _
          %p450 = scmp.ne.s32.totalorder %s309, 0
          // Predicated region
          $region49: #{tpu_custom_call.1} parent=43 // pred_check
            %p451 = pneg %p450
          $region50: #{tpu_custom_call.1} parent=43 // pred_check_branch
            %453 = sbr.rel (%p451) target = $region52
          $region51: #{tpu_custom_call.1} parent=43 // pred_region
            %462 = vst [vmem:[#allocation1] ss:$2 sm:$0xff] %v340
            %s463 = scalar_lea.vmem [#allocation1], 1
            %464 = vst [vmem:[%s463] ss:$2 sm:$0xff] %v341
            %s465 = scalar_lea.vmem [#allocation1], 16
            %466 = vst [vmem:[%s465] ss:$2 sm:$0xff] %v342
            %s467 = scalar_lea.vmem [#allocation1], 17
            %468 = vst [vmem:[%s467] ss:$2 sm:$0xff] %v343
            %s469 = scalar_lea.vmem [#allocation1], 32
            %470 = vst [vmem:[%s469] ss:$2 sm:$0xff] %v344
            %s471 = scalar_lea.vmem [#allocation1], 33
            %472 = vst [vmem:[%s471] ss:$2 sm:$0xff] %v345
            %s473 = scalar_lea.vmem [#allocation1], 48
            %474 = vst [vmem:[%s473] ss:$2 sm:$0xff] %v346
            %s475 = scalar_lea.vmem [#allocation1], 49
            %476 = vst [vmem:[%s475] ss:$2 sm:$0xff] %v347
            %v477 = vld.sshfl [vmem:[#allocation1] sm:$0xff pattern:$0x75316420]
            %v478 = vld.sshfl [vmem:[#allocation1 + $0x10] sm:$0xff pattern:$0x75316420]
            %v479 = vld.sshfl [vmem:[#allocation1 + $0x20] sm:$0xff pattern:$0x75316420]
            %v480 = vld.sshfl [vmem:[#allocation1 + $0x30] sm:$0xff pattern:$0x75316420]
            %v485 = vmul.f32 %v360, %v477
            %v486 = vmul.f32 %v361, %v478
            %v487 = vmul.f32 %v362, %v479
            %v488 = vmul.f32 %v363, %v480
            %v489 = vmul.f32 %v360, %v360
            %v490 = vmul.f32 %v361, %v361
            %v491 = vmul.f32 %v362, %v362
            %v492 = vmul.f32 %v363, %v363
            %v493 = vmul.f32 %v340, %v340
            %v494 = vmul.f32 %v341, %v341
            %v495 = vmul.f32 %v342, %v342
            %v496 = vmul.f32 %v343, %v343
            %v497 = vmul.f32 %v344, %v344
            %v498 = vmul.f32 %v345, %v345
            %v499 = vmul.f32 %v346, %v346
            %v500 = vmul.f32 %v347, %v347
            %509 = vst [vmem:[#allocation1] ss:$2 sm:$0xff] %v493
            %s510 = scalar_lea.vmem [#allocation1], 1
            %511 = vst [vmem:[%s510] ss:$2 sm:$0xff] %v494
            %s512 = scalar_lea.vmem [#allocation1], 16
            %513 = vst [vmem:[%s512] ss:$2 sm:$0xff] %v495
            %s514 = scalar_lea.vmem [#allocation1], 17
            %515 = vst [vmem:[%s514] ss:$2 sm:$0xff] %v496
            %s516 = scalar_lea.vmem [#allocation1], 32
            %517 = vst [vmem:[%s516] ss:$2 sm:$0xff] %v497
            %s518 = scalar_lea.vmem [#allocation1], 33
            %519 = vst [vmem:[%s518] ss:$2 sm:$0xff] %v498
            %s520 = scalar_lea.vmem [#allocation1], 48
            %521 = vst [vmem:[%s520] ss:$2 sm:$0xff] %v499
            %s522 = scalar_lea.vmem [#allocation1], 49
            %523 = vst [vmem:[%s522] ss:$2 sm:$0xff] %v500
            %v524 = vld.sshfl [vmem:[#allocation1] sm:$0xff pattern:$0x75316420]
            %v525 = vld.sshfl [vmem:[#allocation1 + $0x10] sm:$0xff pattern:$0x75316420]
            %v526 = vld.sshfl [vmem:[#allocation1 + $0x20] sm:$0xff pattern:$0x75316420]
            %v527 = vld.sshfl [vmem:[#allocation1 + $0x30] sm:$0xff pattern:$0x75316420]
            %v532 = vadd.f32 %v489, %v524
            %v533 = vadd.f32 %v490, %v525
            %v534 = vadd.f32 %v491, %v526
            %v535 = vadd.f32 %v492, %v527
            %v536 = vld [vmem:[%s290] sm:$0xff]
            %v537 = vadd.f32 %v485, %v486
            %v538 = vadd.f32 %v537, %v487
            %v539 = vadd.f32 %v538, %v488
            %v540 = vadd.f32 %v536, %v539
            %541 = vst [vmem:[%s290] sm:$0xff] %v540
            %v542 = vld [vmem:[%s297] sm:$0xff]
            %v543 = vadd.f32 %v532, %v533
            %v544 = vadd.f32 %v543, %v534
            %v545 = vadd.f32 %v544, %v535
            %v546 = vadd.f32 %v542, %v545
            %547 = vst [vmem:[%s297] sm:$0xff] %v546
          $region52: #{tpu_custom_call.1} parent=43 // pred_fallthru
            _
        $region44: #{tpu_custom_call.1} parent=27 // pred_fallthru
          _
        %s548 = sand.u32 %s124, 1
        %s549 = scalar_lea.sflag [#allocation4], %s548
        %s550 = sand.u32 %s124, 1
        %s551 = smul.addr %s550, 8
        %s552 = scalar_lea.vmem [#allocation7], %s551
        %s553 = sand.u32 %s152, 1
        %s554 = scalar_lea.sflag [#allocation9], %s553
        %s555 = sand.u32 %s152, 1
        %s556 = smul.addr %s555, 8
        %s557 = scalar_lea.vmem [#allocation8], %s556
        // Predicated region
        $region53: #{tpu_custom_call.1} parent=27 // pred_check
          %p558 = pneg %p134
        $region54: #{tpu_custom_call.1} parent=27 // pred_check_branch
          %560 = sbr.rel (%p558) target = $region56
        $region55: #{tpu_custom_call.1} parent=27 // pred_region
          %562 = vsyncadd %s549, 0
          %s563 = sadd.s32 %s33, %s32
          %s564 = smul.addr %s563, 8
          %s565 = scalar_lea.hbm %s2, %s564
          %s567 = sshll.u32 %s552, 4
          %s568 = int_to_ptr.vmem [resolvable:$true] %s567
          %s569 = sshll.u32 %s565, 4
          %s570 = int_to_ptr.hbm [resolvable:$true] %s569
          %572 = dma.vmem_to_hbm [thread:$0]  %s568, 128, %s570, %s549
        $region56: #{tpu_custom_call.1} parent=27 // pred_fallthru
          _
        // Predicated region
        $region57: #{tpu_custom_call.1} parent=27 // pred_check
          %p573 = pneg %p162
        $region58: #{tpu_custom_call.1} parent=27 // pred_check_branch
          %575 = sbr.rel (%p573) target = $region60
        $region59: #{tpu_custom_call.1} parent=27 // pred_region
          %577 = vsyncadd %s554, 0
          %s578 = sadd.s32 %s33, %s32
          %s579 = smul.addr %s578, 8
          %s580 = scalar_lea.hbm %s3, %s579
          %s582 = sshll.u32 %s557, 4
          %s583 = int_to_ptr.vmem [resolvable:$true] %s582
          %s584 = sshll.u32 %s580, 4
          %s585 = int_to_ptr.hbm [resolvable:$true] %s584
          %587 = dma.vmem_to_hbm [thread:$0]  %s583, 128, %s585, %s554
        $region60: #{tpu_custom_call.1} parent=27 // pred_fallthru
          _
      $region28: #{tpu_custom_call.1} parent=5 // pred_fallthru
        _
      %p588 = scmp.le.s32.totalorder 2, %s22
      // Predicated region
      $region61: #{tpu_custom_call.1} parent=5 // pred_check
        %p589 = pneg %p588
      $region62: #{tpu_custom_call.1} parent=5 // pred_check_branch
        %591 = sbr.rel (%p589) target = $region64
      $region63: #{tpu_custom_call.1} parent=5 // pred_region
        %s592 = ssub.s32 %s22, 2
        // Predicated region
        $region65: #{tpu_custom_call.1} parent=63 // pred_check
          %p593 = pneg %p140
        $region66: #{tpu_custom_call.1} parent=63 // pred_check_branch
          %595 = sbr.rel (%p593) target = $region68
        $region67: #{tpu_custom_call.1} parent=63 // pred_region
          %s596 = sand.u32 %s125, 1
          %s597 = scalar_lea.sflag [#allocation4], %s596
          %s598 = sand.u32 %s125, 1
          %s599 = smul.addr %s598, 8
          %s600 = scalar_lea.vmem [#allocation7], %s599
          %602 = dma.done %s597, 128
        $region68: #{tpu_custom_call.1} parent=63 // pred_fallthru
          _
        // Predicated region
        $region69: #{tpu_custom_call.1} parent=63 // pred_check
          %p603 = pneg %p168
        $region70: #{tpu_custom_call.1} parent=63 // pred_check_branch
          %605 = sbr.rel (%p603) target = $region72
        $region71: #{tpu_custom_call.1} parent=63 // pred_region
          %s606 = sand.u32 %s153, 1
          %s607 = scalar_lea.sflag [#allocation9], %s606
          %s608 = sand.u32 %s153, 1
          %s609 = smul.addr %s608, 8
          %s610 = scalar_lea.vmem [#allocation8], %s609
          %612 = dma.done %s607, 128
        $region72: #{tpu_custom_call.1} parent=63 // pred_fallthru
          _
      $region64: #{tpu_custom_call.1} parent=5 // pred_fallthru
        _
    $region6: #{tpu_custom_call.1} parent=1 // loop_footer
      %s26 = sadd.s32 1, %s22
    $region7: #{tpu_custom_call.1} parent=1 // loop_footer_branch
      %21 = sbr.rel target = $region3
    $region8: #{tpu_custom_call.1} parent=1 // loop_exit
      _
    %613 = vsyncpa [#allocation3], 1
    %s614 = scalar_lea.sflag [#allocation3], 1
    %615 = vsyncpa %s614, 1
    %616 = vsyncpa [#allocation6], 1
    %s617 = scalar_lea.sflag [#allocation6], 1
    %618 = vsyncpa %s617, 1
    %619 = vsyncpa [#allocation4], 1
    %s620 = scalar_lea.sflag [#allocation4], 1
    %621 = vsyncpa %s620, 1
    %622 = vsyncpa [#allocation9], 1
    %s623 = scalar_lea.sflag [#allocation9], 1
    %624 = vsyncpa %s623, 1

</llo_original>
